<compile_context>
chip_gen: v5e
topology: v5e:2x2
jax: 0.10.0
libtpu: 0.0.40
codegen_flags: <defaults>
</compile_context>

<pallas_src>
import jax
import jax.numpy as jnp
from jax.experimental import pallas as pl
from jax.experimental.pallas import tpu as pltpu


def _round_up(x, m):
    return ((x + m - 1) // m) * m


def _pick_tile(dim, target):
    """Full dim if small; otherwise the target tile (must divide evenly)."""
    if dim <= target:
        return dim
    assert dim % target == 0, f"dim {dim} not divisible by tile {target}"
    return target


def _ff_kernel(q_ref, v_ref, ww_ref, bw_ref, wh_ref, bh_ref, out_ref, acc_ref):
    # q_ref, v_ref : [tm, H]   activations (seq dim squeezed; seq index 0)
    # ww_ref       : [H, tn]   W_w^T (pre-transposed [in, out]), tiled over out
    # bw_ref       : [1, tn]   f32, tiled over out
    # wh_ref       : [tn, Kp]  W_h^T (pre-transposed [in, out_padded]), tiled over in
    # bh_ref       : [1, Kp]   f32, constant (single-buffered)
    # out_ref      : [tm, Kp]
    # acc_ref      : [tm, Kp]  f32 logit accumulator
    n = pl.program_id(1)

    @pl.when(n == 0)
    def _():
        acc_ref[...] = jnp.zeros_like(acc_ref)

    # Recomputing s each n-step is O(tm*H) VPU work vs O(tm*H*tn) MXU work
    # per step — negligible; cast to bf16 so the MXU runs at bf16 peak.
    s = (q_ref[...] + v_ref[...]).astype(ww_ref.dtype)            # [tm, H] bf16

    h_chunk = jnp.tanh(
        jnp.dot(s, ww_ref[...], preferred_element_type=jnp.float32)
        + bw_ref[...]
    )                                                             # [tm, tn] f32

    acc_ref[...] += jnp.dot(
        h_chunk.astype(wh_ref.dtype), wh_ref[...],
        preferred_element_type=jnp.float32,
    )                                                             # [tm, Kp]

    @pl.when(n == pl.num_programs(1) - 1)
    def _():
        out_ref[...] = (acc_ref[...] + bh_ref[...]).astype(out_ref.dtype)


def prepare_params(W_w, b_w, W_h, b_h, *, param_dtype=jnp.bfloat16):
    """One-time parameter relayout (do at load time, NOT per forward call):
    transpose to [in, out], zero-pad K up to a lane-dense multiple of 128,
    cast weights to bf16 (biases stay f32 for the f32 accumulate path)."""
    H = W_w.shape[0]
    K = W_h.shape[0]
    assert W_w.shape == (H, H) and W_h.shape == (K, H)
    Kp = max(_round_up(K, 128), 128)

    W_w_t = W_w.T.astype(param_dtype)                       # [H_in, H_out]
    W_h_t = W_h.T                                            # [H_in, K]
    b_h_p = b_h
    if Kp != K:
        W_h_t = jnp.pad(W_h_t, ((0, 0), (0, Kp - K)))
        b_h_p = jnp.pad(b_h, (0, Kp - K))
    W_h_t = W_h_t.astype(param_dtype)                        # [H_in, Kp]

    return {
        "W_w_t": W_w_t,
        "b_w": b_w.reshape(1, H).astype(jnp.float32),
        "W_h_t": W_h_t,
        "b_h": b_h_p.reshape(1, Kp).astype(jnp.float32),
        "K": K,
        "Kp": Kp,
    }


def feedforward_pallas(x_img_feats, x_ques_feats, params,
                       *, tm_target=256, tn_target=512):
    """x_*_feats: [seq, B, H]; params from prepare_params. Returns [B, K]."""
    seq, B, H = x_ques_feats.shape
    assert x_img_feats.shape == (seq, B, H)
    K, Kp = params["K"], params["Kp"]

    # tm: batch tile. Larger tm means fewer W_w/W_h re-fetches from HBM
    # (weights are streamed once per m tile); keep >= 2 m tiles on v7x so the
    # "parallel" axis shards across both TensorCores at production batch.
    tm = _pick_tile(B, tm_target)     # sublane axis (multiple of 8 or full B)
    # tn: H_out tile for the first matmul / H_in tile for the second
    # (multiple of 256 at production sizes to fill the v6e/v7x MXU).
    tn = _pick_tile(H, tn_target)
    grid = (B // tm, H // tn)

    out_p = pl.pallas_call(
        _ff_kernel,
        out_shape=jax.ShapeDtypeStruct((B, Kp), x_ques_feats.dtype),
        grid=grid,
        in_specs=[
            # seq dim squeezed -> only the seq=0 tile is ever DMA'd.
            pl.BlockSpec((None, tm, H), lambda m, n: (0, m, 0)),   # x_ques
            pl.BlockSpec((None, tm, H), lambda m, n: (0, m, 0)),   # x_img
            pl.BlockSpec((H, tn), lambda m, n: (0, n)),            # W_w^T chunk
            pl.BlockSpec((1, tn), lambda m, n: (0, n)),            # b_w chunk
            pl.BlockSpec((tn, Kp), lambda m, n: (n, 0)),           # W_h^T chunk
            pl.BlockSpec((1, Kp), lambda m, n: (0, 0),
                         pipeline_mode=pl.Buffered(1)),            # b_h (constant)
        ],
        out_specs=pl.BlockSpec((tm, Kp), lambda m, n: (m, 0)),
        scratch_shapes=[pltpu.VMEM((tm, Kp), jnp.float32)],
        compiler_params=pltpu.CompilerParams(
            dimension_semantics=("parallel", "arbitrary"),
            # Above the 16 MiB (v5e) / 32 MiB (v6e, v7x) scoped defaults,
            # comfortably below every chip's physical VMEM.
            vmem_limit_bytes=48 * 1024 * 1024,
        ),
    )(x_ques_feats, x_img_feats,
      params["W_w_t"], params["b_w"], params["W_h_t"], params["b_h"])

    return out_p[:, :K] if Kp != K else out_p


def feedforward_ref(x_img_feats, x_ques_feats, W_w, b_w, W_h, b_h):
    q_w = x_ques_feats[0]
    v_w = x_img_feats[0]
    h_w = jnp.tanh((q_w + v_w) @ W_w.T + b_w)
    return h_w @ W_h.T + b_h


if __name__ == "__main__":
    hidden_dim = 32
    K = 8
    seq = 4
    batch = 8

    key = jax.random.PRNGKey(0)
    k_img, k_ques, k_ww, k_bw, k_wh, k_bh = jax.random.split(key, 6)

    x_img_feats = jax.random.normal(k_img, (seq, batch, hidden_dim), jnp.float32)
    x_ques_feats = jax.random.normal(k_ques, (seq, batch, hidden_dim), jnp.float32)

    # Deterministic parameter init (nn.Linear-like uniform scaling), PyTorch layout.
    lim_w = 1.0 / (hidden_dim ** 0.5)
    W_w = jax.random.uniform(k_ww, (hidden_dim, hidden_dim), jnp.float32, -lim_w, lim_w)
    b_w = jax.random.uniform(k_bw, (hidden_dim,), jnp.float32, -lim_w, lim_w)
    W_h = jax.random.uniform(k_wh, (K, hidden_dim), jnp.float32, -lim_w, lim_w)
    b_h = jax.random.uniform(k_bh, (K,), jnp.float32, -lim_w, lim_w)

    params = prepare_params(W_w, b_w, W_h, b_h)            # one-time relayout

    out = feedforward_pallas(x_img_feats, x_ques_feats, params)
    out = jax.block_until_ready(out)

    ref = feedforward_ref(x_img_feats, x_ques_feats, W_w, b_w, W_h, b_h)
    assert out.shape == (batch, K), out.shape
    # bf16 weights / bf16 MXU inputs with f32 accumulation -> looser tolerance.
    assert jnp.allclose(out, ref, atol=3e-2, rtol=3e-2), "mismatch vs reference"

    print("KERNEL_OK")
</pallas_src>

<mosaic_0001>
module attributes {stable_mosaic.version = 11 : i64} {
  func.func @_ff_kernel(%arg0: i32, %arg1: i32, %arg2: memref<1x8x32xf32, #tpu.memory_space<vmem>>, %arg3: memref<1x8x32xf32, #tpu.memory_space<vmem>>, %arg4: memref<32x32xbf16, #tpu.memory_space<vmem>>, %arg5: memref<1x32xf32, #tpu.memory_space<vmem>>, %arg6: memref<32x128xbf16, #tpu.memory_space<vmem>>, %arg7: memref<1x128xf32, #tpu.memory_space<vmem>>, %arg8: memref<8x128xf32, #tpu.memory_space<vmem>>, %arg9: memref<8x128xf32, #tpu.memory_space<vmem>>) attributes {dimension_semantics = [#tpu.dimension_semantics<parallel>, #tpu.dimension_semantics<arbitrary>], iteration_bounds = array<i64: 1, 1>, scalar_prefetch = 0 : i64, scratch_operands = 1 : i64, tpu.core_type = #tpu.core_type<tc>, window_params = [{transform_indices = @transform_0, window_bounds = array<i64: 1, 8, 32>}, {transform_indices = @transform_1, window_bounds = array<i64: 1, 8, 32>}, {transform_indices = @transform_2, window_bounds = array<i64: 32, 32>}, {transform_indices = @transform_3, window_bounds = array<i64: 1, 32>}, {transform_indices = @transform_4, window_bounds = array<i64: 32, 128>}, {pipeline_mode = #tpu.pipeline_mode<synchronous>, transform_indices = @transform_5, window_bounds = array<i64: 1, 128>}, {transform_indices = @transform_6, window_bounds = array<i64: 8, 128>}]} {
    %c0_i32 = arith.constant 0 : i32
    %0 = arith.cmpi eq, %arg1, %c0_i32 : i32
    %1 = arith.extui %0 : i1 to i32
    %c0_i32_0 = arith.constant 0 : i32
    %2 = arith.cmpi ne, %1, %c0_i32_0 : i32
    scf.if %2 {
      %cst_19 = arith.constant 0.000000e+00 : f32
      %24 = vector.broadcast %cst_19 : f32 to vector<8x128xf32>
      %c0_20 = arith.constant 0 : index
      %c0_21 = arith.constant 0 : index
      %25 = vector.load %arg9[%c0_20, %c0_21] : memref<8x128xf32, #tpu.memory_space<vmem>>, vector<8x128xf32>
      tpu.vector_store %arg9[%c0_20, %c0_21], %24 {strides = array<i32>} : memref<8x128xf32, #tpu.memory_space<vmem>>, vector<8x128xf32>,
    } else {
    }
    %c0 = arith.constant 0 : index
    %c0_1 = arith.constant 0 : index
    %c0_2 = arith.constant 0 : index
    %3 = vector.load %arg2[%c0, %c0_1, %c0_2] : memref<1x8x32xf32, #tpu.memory_space<vmem>>, vector<1x8x32xf32>
    %4 = vector.shape_cast %3 : vector<1x8x32xf32> to vector<8x32xf32>
    %c0_3 = arith.constant 0 : index
    %c0_4 = arith.constant 0 : index
    %c0_5 = arith.constant 0 : index
    %5 = vector.load %arg3[%c0_3, %c0_4, %c0_5] : memref<1x8x32xf32, #tpu.memory_space<vmem>>, vector<1x8x32xf32>
    %6 = vector.shape_cast %5 : vector<1x8x32xf32> to vector<8x32xf32>
    %7 = arith.addf %4, %6 : vector<8x32xf32>
    %8 = arith.truncf %7 : vector<8x32xf32> to vector<8x32xbf16>
    %c0_6 = arith.constant 0 : index
    %c0_7 = arith.constant 0 : index
    %9 = vector.load %arg4[%c0_6, %c0_7] : memref<32x32xbf16, #tpu.memory_space<vmem>>, vector<32x32xbf16>
    %cst = arith.constant dense<0.000000e+00> : vector<8x32xf32>
    %10 = tpu.matmul %8, %9, %cst {dimension_numbers = #tpu.dot_dimension_numbers<[1], [0], [0], [1], [0, 0, 1, 1], [], []>} : vector<8x32xbf16>, vector<32x32xbf16>, vector<8x32xf32> -> vector<8x32xf32>
    %c0_8 = arith.constant 0 : index
    %c0_9 = arith.constant 0 : index
    %11 = vector.load %arg5[%c0_8, %c0_9] : memref<1x32xf32, #tpu.memory_space<vmem>>, vector<1x32xf32>
    %12 = vector.broadcast %11 : vector<1x32xf32> to vector<8x32xf32>
    %13 = arith.addf %10, %12 : vector<8x32xf32>
    %14 = math.tanh %13 : vector<8x32xf32>
    %c0_10 = arith.constant 0 : index
    %c0_11 = arith.constant 0 : index
    %15 = vector.load %arg9[%c0_10, %c0_11] : memref<8x128xf32, #tpu.memory_space<vmem>>, vector<8x128xf32>
    %16 = arith.truncf %14 : vector<8x32xf32> to vector<8x32xbf16>
    %c0_12 = arith.constant 0 : index
    %c0_13 = arith.constant 0 : index
    %17 = vector.load %arg6[%c0_12, %c0_13] : memref<32x128xbf16, #tpu.memory_space<vmem>>, vector<32x128xbf16>
    %cst_14 = arith.constant dense<0.000000e+00> : vector<8x128xf32>
    %18 = tpu.matmul %16, %17, %cst_14 {dimension_numbers = #tpu.dot_dimension_numbers<[1], [0], [0], [1], [0, 0, 1, 1], [], []>} : vector<8x32xbf16>, vector<32x128xbf16>, vector<8x128xf32> -> vector<8x128xf32>
    %19 = arith.addf %15, %18 : vector<8x128xf32>
    %c0_15 = arith.constant 0 : index
    %c0_16 = arith.constant 0 : index
    %20 = vector.load %arg9[%c0_15, %c0_16] : memref<8x128xf32, #tpu.memory_space<vmem>>, vector<8x128xf32>
    tpu.vector_store %arg9[%c0_15, %c0_16], %19 {strides = array<i32>} : memref<8x128xf32, #tpu.memory_space<vmem>>, vector<8x128xf32>,
    %c0_i32_17 = arith.constant 0 : i32
    %21 = arith.cmpi eq, %arg1, %c0_i32_17 : i32
    %22 = arith.extui %21 : i1 to i32
    %c0_i32_18 = arith.constant 0 : i32
    %23 = arith.cmpi ne, %22, %c0_i32_18 : i32
    scf.if %23 {
      %c0_19 = arith.constant 0 : index
      %c0_20 = arith.constant 0 : index
      %24 = vector.load %arg9[%c0_19, %c0_20] : memref<8x128xf32, #tpu.memory_space<vmem>>, vector<8x128xf32>
      %c0_21 = arith.constant 0 : index
      %c0_22 = arith.constant 0 : index
      %25 = vector.load %arg7[%c0_21, %c0_22] : memref<1x128xf32, #tpu.memory_space<vmem>>, vector<1x128xf32>
      %26 = vector.broadcast %25 : vector<1x128xf32> to vector<8x128xf32>
      %27 = arith.addf %24, %26 : vector<8x128xf32>
      %c0_23 = arith.constant 0 : index
      %c0_24 = arith.constant 0 : index
      %28 = vector.load %arg8[%c0_23, %c0_24] : memref<8x128xf32, #tpu.memory_space<vmem>>, vector<8x128xf32>
      tpu.vector_store %arg8[%c0_23, %c0_24], %27 {strides = array<i32>} : memref<8x128xf32, #tpu.memory_space<vmem>>, vector<8x128xf32>,
    } else {
    }
    return
  }
  func.func @transform_0(%arg0: i32, %arg1: i32) -> (i32, i32, i32) {
    %c0_i32 = arith.constant 0 : i32
    %c0_i32_0 = arith.constant 0 : i32
    %c0_i32_1 = arith.constant 0 : i32
    return %c0_i32, %arg0, %c0_i32_0 : i32, i32, i32
  }
  func.func @transform_1(%arg0: i32, %arg1: i32) -> (i32, i32, i32) {
    %c0_i32 = arith.constant 0 : i32
    %c0_i32_0 = arith.constant 0 : i32
    %c0_i32_1 = arith.constant 0 : i32
    return %c0_i32, %arg0, %c0_i32_0 : i32, i32, i32
  }
  func.func @transform_2(%arg0: i32, %arg1: i32) -> (i32, i32) {
    %c0_i32 = arith.constant 0 : i32
    %c0_i32_0 = arith.constant 0 : i32
    return %c0_i32, %arg1 : i32, i32
  }
  func.func @transform_3(%arg0: i32, %arg1: i32) -> (i32, i32) {
    %c0_i32 = arith.constant 0 : i32
    %c0_i32_0 = arith.constant 0 : i32
    return %c0_i32, %arg1 : i32, i32
  }
  func.func @transform_4(%arg0: i32, %arg1: i32) -> (i32, i32) {
    %c0_i32 = arith.constant 0 : i32
    %c0_i32_0 = arith.constant 0 : i32
    return %arg1, %c0_i32 : i32, i32
  }
  func.func @transform_5(%arg0: i32, %arg1: i32) -> (i32, i32) {
    %c0_i32 = arith.constant 0 : i32
    %c0_i32_0 = arith.constant 0 : i32
    %c0_i32_1 = arith.constant 0 : i32
    return %c0_i32, %c0_i32_0 : i32, i32
  }
  func.func @transform_6(%arg0: i32, %arg1: i32) -> (i32, i32) {
    %c0_i32 = arith.constant 0 : i32
    %c0_i32_0 = arith.constant 0 : i32
    return %arg0, %c0_i32 : i32, i32
  }
}

</mosaic_0001>

<llo_original>
// kernel: tpu_custom_call.1
$region0: #{tpu_custom_call.1}
  #allocation0 [shape = 'u32[]', space=smem, size = 0x4, offset = 0x4, fixed_abs, tag = 'smem constant byte address 0x4 - core index']
  #allocation1 [shape = 'u32[72,128]{1,0:T(1,128)}', space=vmem, size = 0x9000, scoped, tag = 'internal scratch']
  #allocation2 [shape = 'f32[8,128]{1,0:T(8,128)}', space=vmem, size = 0x1000, scoped, tag = 'scratch operand']
  %s0 = inlined_call_operand.hbm [shape: f32[4,8,32], index: 0, kind: input, shape index: {}]
  %s1 = inlined_call_operand.hbm [shape: f32[4,8,32], index: 1, kind: input, shape index: {}]
  %s2 = inlined_call_operand.hbm [shape: bf16[32,32], index: 2, kind: input, shape index: {}]
  %s3 = inlined_call_operand.vmem [shape: f32[1,32], index: 3, kind: input, shape index: {}]
  %s4 = inlined_call_operand.hbm [shape: bf16[32,128], index: 4, kind: input, shape index: {}]
  %s5 = inlined_call_operand.vmem [shape: f32[1,128], index: 5, kind: input, shape index: {}]
  %s6 = inlined_call_operand.hbm [shape: f32[8,128], index: 6, kind: output, shape index: {}]
  %s7 = sld [smem:[#allocation0]]
  $region58: #{tpu_custom_call.1} parent=0
    _
  %s9 = ssub.s32 1, %s7
  %s10 = scalar_select 0, %s9, %s7
  $region1: #{tpu_custom_call.1} parent=0
    #allocation3 [shape = 'u8[4096]{0}', space=vmem, size = 0x1000, scoped, tag = 'input window, operand 0, single buffered']
    #allocation4 [shape = 's32[1]{0}', space=sflag, size = 0x4, scoped, tag = 'scoped memory for tpu_custom_call.1']
    #allocation5 [shape = 's32[1]{0}', space=sflag, size = 0x4, scoped, tag = 'scoped memory for tpu_custom_call.1']
    #allocation6 [shape = 'u8[4096]{0}', space=vmem, size = 0x1000, scoped, tag = 'input window, operand 1, single buffered']
    #allocation7 [shape = 's32[1]{0}', space=sflag, size = 0x4, scoped, tag = 'scoped memory for tpu_custom_call.1']
    #allocation8 [shape = 'u8[8192]{0}', space=vmem, size = 0x2000, scoped, tag = 'input window, operand 2, single buffered']
    #allocation9 [shape = 'u8[8192]{0}', space=vmem, size = 0x2000, scoped, tag = 'input window, operand 4, single buffered']
    #allocation10 [shape = 's32[1]{0}', space=sflag, size = 0x4, scoped, tag = 'scoped memory for tpu_custom_call.1']
    #allocation11 [shape = 'u8[4096]{0}', space=vmem, size = 0x1000, scoped, tag = 'output window, operand 0, single buffered']
    %11 = vsyncpa [#allocation4], 0
    %12 = vsyncpa [#allocation7], 0
    %13 = vsyncpa [#allocation10], 0
    %14 = vsyncpa [#allocation5], 0
    // Predicated region
    $region2: #{tpu_custom_call.1} parent=1 // pred_check
      _
    $region3: #{tpu_custom_call.1} parent=1 // pred_check_branch
      %16 = sbr.rel (0) target = $region5
    $region4: #{tpu_custom_call.1} parent=1 // pred_region
      %18 = vsyncadd [#allocation4], 0
      %s20 = sshll.u32 %s0, 4
      %s21 = int_to_ptr.hbm [resolvable:$true] %s20
      %s22 = sshll.u32 [#allocation3], 4
      %s23 = int_to_ptr.vmem [resolvable:$true] %s22
      %25 = dma.hbm_to_vmem [thread:$0]  %s21, 128, %s23, [#allocation4]
    $region5: #{tpu_custom_call.1} parent=1 // pred_fallthru
      _
    // Predicated region
    $region6: #{tpu_custom_call.1} parent=1 // pred_check
      _
    $region7: #{tpu_custom_call.1} parent=1 // pred_check_branch
      %27 = sbr.rel (0) target = $region9
    $region8: #{tpu_custom_call.1} parent=1 // pred_region
      %29 = vsyncadd [#allocation7], 0
      %s31 = sshll.u32 %s1, 4
      %s32 = int_to_ptr.hbm [resolvable:$true] %s31
      %s33 = sshll.u32 [#allocation6], 4
      %s34 = int_to_ptr.vmem [resolvable:$true] %s33
      %36 = dma.hbm_to_vmem [thread:$0]  %s32, 128, %s34, [#allocation7]
    $region9: #{tpu_custom_call.1} parent=1 // pred_fallthru
      _
    // Predicated region
    $region10: #{tpu_custom_call.1} parent=1 // pred_check
      _
    $region11: #{tpu_custom_call.1} parent=1 // pred_check_branch
      %38 = sbr.rel (0) target = $region13
    $region12: #{tpu_custom_call.1} parent=1 // pred_region
      %40 = vsyncadd [#allocation7], 0
      %s41 = sshll.u32 %s2, 4
      %s42 = int_to_ptr.hbm [resolvable:$true] %s41
      %s43 = sshll.u32 [#allocation8], 4
      %s44 = int_to_ptr.vmem [resolvable:$true] %s43
      %49 = dma.hbm_to_vmem [thread:$0]  %s42, 256, %s44, [#allocation7], 64, 64, 4
    $region13: #{tpu_custom_call.1} parent=1 // pred_fallthru
      _
    // Predicated region
    $region14: #{tpu_custom_call.1} parent=1 // pred_check
      _
    $region15: #{tpu_custom_call.1} parent=1 // pred_check_branch
      %51 = sbr.rel (0) target = $region17
    $region16: #{tpu_custom_call.1} parent=1 // pred_region
      _
    $region17: #{tpu_custom_call.1} parent=1 // pred_fallthru
      _
    // Predicated region
    $region18: #{tpu_custom_call.1} parent=1 // pred_check
      _
    $region19: #{tpu_custom_call.1} parent=1 // pred_check_branch
      %53 = sbr.rel (0) target = $region21
    $region20: #{tpu_custom_call.1} parent=1 // pred_region
      %55 = vsyncadd [#allocation10], 0
      %s56 = sshll.u32 %s4, 4
      %s57 = int_to_ptr.hbm [resolvable:$true] %s56
      %s58 = sshll.u32 [#allocation9], 4
      %s59 = int_to_ptr.vmem [resolvable:$true] %s58
      %64 = dma.hbm_to_vmem [thread:$0]  %s57, 256, %s59, [#allocation10], 64, 64, 4
    $region21: #{tpu_custom_call.1} parent=1 // pred_fallthru
      _
    // Predicated region
    $region22: #{tpu_custom_call.1} parent=1 // pred_check
      _
    $region23: #{tpu_custom_call.1} parent=1 // pred_check_branch
      %66 = sbr.rel (0) target = $region25
    $region24: #{tpu_custom_call.1} parent=1 // pred_region
      _
    $region25: #{tpu_custom_call.1} parent=1 // pred_fallthru
      _
    // Predicated region
    $region26: #{tpu_custom_call.1} parent=1 // pred_check
      _
    $region27: #{tpu_custom_call.1} parent=1 // pred_check_branch
      %68 = sbr.rel (0) target = $region29
    $region28: #{tpu_custom_call.1} parent=1 // pred_region
      %70 = dma.done [#allocation4], 128
    $region29: #{tpu_custom_call.1} parent=1 // pred_fallthru
      _
    // Predicated region
    $region30: #{tpu_custom_call.1} parent=1 // pred_check
      _
    $region31: #{tpu_custom_call.1} parent=1 // pred_check_branch
      %72 = sbr.rel (0) target = $region33
    $region32: #{tpu_custom_call.1} parent=1 // pred_region
      %74 = dma.done [#allocation7], 128
    $region33: #{tpu_custom_call.1} parent=1 // pred_fallthru
      _
    // Predicated region
    $region34: #{tpu_custom_call.1} parent=1 // pred_check
      _
    $region35: #{tpu_custom_call.1} parent=1 // pred_check_branch
      %76 = sbr.rel (0) target = $region37
    $region36: #{tpu_custom_call.1} parent=1 // pred_region
      %78 = dma.done [#allocation7], 256
    $region37: #{tpu_custom_call.1} parent=1 // pred_fallthru
      _
    // Predicated region
    $region38: #{tpu_custom_call.1} parent=1 // pred_check
      _
    $region39: #{tpu_custom_call.1} parent=1 // pred_check_branch
      %80 = sbr.rel (0) target = $region41
    $region40: #{tpu_custom_call.1} parent=1 // pred_region
      %82 = dma.done [#allocation10], 256
    $region41: #{tpu_custom_call.1} parent=1 // pred_fallthru
      _
    %p84 = scmp.eq.s32.totalorder 0, 0
    // Predicated region
    $region42: #{tpu_custom_call.1} parent=1 // pred_check
      %p85 = pneg %p84
    $region43: #{tpu_custom_call.1} parent=1 // pred_check_branch
      %87 = sbr.rel (%p85) target = $region45
    $region44: #{tpu_custom_call.1} parent=1 // pred_region
      %88 = vst [vmem:[#allocation2] sm:$0xff] 0.0
    $region45: #{tpu_custom_call.1} parent=1 // pred_fallthru
      _
    %v89 = vld [vmem:[#allocation3] sm:$0xff]
    %v90 = vld [vmem:[#allocation6] sm:$0xff]
    %v91 = vadd.f32 %v89, %v90
    %v92 = vpack.c.bf16 %v91, %v91
    %v93 = vld [vmem:[#allocation8] sm:$0xf]
    %v94 = vld [vmem:[#allocation8 + $0x4] sm:$0xf]
    %v95 = vld [vmem:[#allocation8 + $0x8] sm:$0xf]
    %v96 = vld [vmem:[#allocation8 + $0xc] sm:$0xf]
    %v97 = vld [vmem:[%s3] sm:$0x1]
    %v99 = vperm.slane %v97, 0
    %v105 = vunpack.c.l.b16 %v93
    %v106 = vunpack.c.l.b16 %v94
    %v107 = vunpack.c.l.b16 %v95
    %v108 = vunpack.c.l.b16 %v96
    %v109 = vpack.c.b16 %v106, %v105
    %v110 = vpack.c.b16 %v108, %v107
    %vm113 = vcmask 261120
    %v115 = vsel %vm113, %v92, 0
    %117 = vmatpush.bf16.msra.mxu0 0
    %118 = vmatpush.bf16.msra.mxu0 0
    %119 = vmatpush.bf16.msra.mxu0 0
    %120 = vmatpush.bf16.msra.mxu0 0
    %121 = vmatpush.bf16.msra.mxu0 0
    %122 = vmatpush.bf16.msra.mxu0 0
    %123 = vmatpush.bf16.msra.mxu0 %v110
    %124 = vmatpush.bf16.msra.mxu0 %v109
    %125 = vmatmul.bf16.gmra.mxu0 %v115
    %v126 = vpop.f32.mrf.mxu0
    %v127 = vadd.f32 %v99, %v126
    %v128 = vpop.f32.mrf.mxu0
    %129 = vdwg.mxu0
    %v130 = vtanh.pop %v127
    %v131 = vld [vmem:[#allocation2] sm:$0xff]
    %v132 = vpack.c.bf16 %v130, %v130
    %v133 = vld [vmem:[#allocation9] sm:$0xf]
    %v134 = vld [vmem:[#allocation9 + $0x4] sm:$0xf]
    %v135 = vld [vmem:[#allocation9 + $0x8] sm:$0xf]
    %v136 = vld [vmem:[#allocation9 + $0xc] sm:$0xf]
    %v141 = vunpack.c.l.b16 %v133
    %v142 = vunpack.c.l.b16 %v134
    %v143 = vunpack.c.l.b16 %v135
    %v144 = vunpack.c.l.b16 %v136
    %v145 = vpack.c.b16 %v142, %v141
    %v146 = vpack.c.b16 %v144, %v143
    %v150 = vsel %vm113, %v132, 0
    %152 = vmatpush.bf16.msra.mxu0 0
    %153 = vmatpush.bf16.msra.mxu0 0
    %154 = vmatpush.bf16.msra.mxu0 0
    %155 = vmatpush.bf16.msra.mxu0 0
    %156 = vmatpush.bf16.msra.mxu0 0
    %157 = vmatpush.bf16.msra.mxu0 0
    %158 = vmatpush.bf16.msra.mxu0 %v146
    %159 = vmatpush.bf16.msra.mxu0 %v145
    %160 = vmatmul.bf16.gmra.mxu0 %v150
    %v161 = vpop.f32.mrf.mxu0
    %v162 = vadd.f32 0.0, %v161
    %v163 = vpop.f32.mrf.mxu0
    %164 = vdwg.mxu0
    %v165 = vadd.f32 %v131, %v162
    %166 = vst [vmem:[#allocation2] sm:$0xff] %v165
    // Predicated region
    $region46: #{tpu_custom_call.1} parent=1 // pred_check
      %p167 = pneg %p84
    $region47: #{tpu_custom_call.1} parent=1 // pred_check_branch
      %169 = sbr.rel (%p167) target = $region49
    $region48: #{tpu_custom_call.1} parent=1 // pred_region
      %v170 = vld [vmem:[#allocation2] sm:$0xff]
      %v171 = vld [vmem:[%s5] sm:$0x1]
      %v173 = vperm.slane %v171, 0
      %v175 = vadd.f32 %v170, %v173
      %176 = vst [vmem:[#allocation11] sm:$0xff] %v175
    $region49: #{tpu_custom_call.1} parent=1 // pred_fallthru
      _
    // Predicated region
    $region50: #{tpu_custom_call.1} parent=1 // pred_check
      _
    $region51: #{tpu_custom_call.1} parent=1 // pred_check_branch
      %178 = sbr.rel (0) target = $region53
    $region52: #{tpu_custom_call.1} parent=1 // pred_region
      %180 = vsyncadd [#allocation5], 0
      %s182 = sshll.u32 [#allocation11], 4
      %s183 = int_to_ptr.vmem [resolvable:$true] %s182
      %s184 = sshll.u32 %s6, 4
      %s185 = int_to_ptr.hbm [resolvable:$true] %s184
      %187 = dma.vmem_to_hbm [thread:$0]  %s183, 128, %s185, [#allocation5]
    $region53: #{tpu_custom_call.1} parent=1 // pred_fallthru
      _
    // Predicated region
    $region54: #{tpu_custom_call.1} parent=1 // pred_check
      _
    $region55: #{tpu_custom_call.1} parent=1 // pred_check_branch
      %189 = sbr.rel (0) target = $region57
    $region56: #{tpu_custom_call.1} parent=1 // pred_region
      %191 = dma.done [#allocation5], 128
    $region57: #{tpu_custom_call.1} parent=1 // pred_fallthru
      _
    %192 = vsyncpa [#allocation4], 1
    %193 = vsyncpa [#allocation7], 1
    %194 = vsyncpa [#allocation10], 1
    %195 = vsyncpa [#allocation5], 1

</llo_original>
